<compile_context>
chip_gen: v5e
topology: v5e:2x2
jax: 0.10.0
libtpu: 0.0.40
codegen_flags: <defaults>
</compile_context>

<pallas_src>
import functools

import jax
import jax.numpy as jnp
from jax.experimental import pallas as pl
from jax.experimental.pallas import tpu as pltpu


# ----------------------------------------------------------------------------
# Kernel: one block of (TB, H, W) images -> (TB, H_out, W_out) circularly
# padded images. Pad amounts are static Python ints baked into the kernel, so
# all slices below are static region loads/stores (no concat, no temp slab).
# ----------------------------------------------------------------------------
def _circular_pad_kernel(x_ref, o_ref, *, pad):
    pad_l, pad_r, pad_t, pad_b = pad
    _, H, W = x_ref.shape

    # (out_start, length, in_start) bands for rows (H) and columns (W).
    row_bands = []
    if pad_t:
        row_bands.append((0, pad_t, H - pad_t))          # top wrap
    row_bands.append((pad_t, H, 0))                      # center
    if pad_b:
        row_bands.append((pad_t + H, pad_b, 0))          # bottom wrap

    col_bands = []
    if pad_l:
        col_bands.append((0, pad_l, W - pad_l))          # left wrap
    col_bands.append((pad_l, W, 0))                      # center
    if pad_r:
        col_bands.append((pad_l + W, pad_r, 0))          # right wrap

    # Up to 9 direct region copies; every output element written exactly once.
    for (or0, rlen, ir0) in row_bands:
        for (oc0, clen, ic0) in col_bands:
            o_ref[:, or0:or0 + rlen, oc0:oc0 + clen] = (
                x_ref[:, ir0:ir0 + rlen, ic0:ic0 + clen])


# ----------------------------------------------------------------------------
# Block-size planning: physical-footprint aware (tile padding + double
# buffering), per-step HBM-traffic floor, v7x grid-split cap.
# ----------------------------------------------------------------------------
def _round_up(x, m):
    return (x + m - 1) // m * m


def _plan_blocks(B, H, W, H_out, W_out, itemsize):
    # Physical VMEM bytes per batch element: (8,128)-padded input + output
    # tiles, each double-buffered by the BlockSpec pipeline.
    in_pad = _round_up(H, 8) * _round_up(W, 128) * itemsize
    out_pad = _round_up(H_out, 8) * _round_up(W_out, 128) * itemsize
    per_b_phys = 2 * (in_pad + out_pad)
    # Nominal HBM traffic per batch element (read input + write output).
    per_b_hbm = (H * W + H_out * W_out) * itemsize

    try:
        phys_vmem = int(pltpu.get_tpu_info().vmem_capacity_bytes)
    except Exception:
        phys_vmem = 64 << 20  # conservative (v7x per-TC) fallback
    budget = min(phys_vmem // 2, 48 << 20)   # leave headroom for the compiler

    tb_fit = max(1, budget // per_b_phys)                 # fits VMEM budget
    tb_amort = max(1, pl.cdiv(2 << 20, per_b_hbm))        # >= ~2 MiB HBM / step
    tb = max(1, min(B, tb_fit, tb_amort))
    if B >= 2:
        tb = min(tb, pl.cdiv(B, 2))  # >= 2 grid steps -> v7x megacore can split

    footprint = tb * per_b_phys
    vmem_limit = int(min(max(footprint + (8 << 20), 32 << 20),
                         max(phys_vmem - (8 << 20), 16 << 20)))
    return tb, vmem_limit


# ----------------------------------------------------------------------------
# Wrapper: F.pad(x, pad, mode='circular') for 4D NCHW input.
# pad is in PyTorch F.pad order: (left, right) or (left, right, top, bottom).
# ----------------------------------------------------------------------------
@functools.partial(jax.jit, static_argnames=("pad",))
def circular_pad2d(x, pad):
    pad = tuple(int(p) for p in pad)
    if len(pad) == 2:
        pad = (pad[0], pad[1], 0, 0)
    pad_l, pad_r, pad_t, pad_b = pad
    N, C, H, W = x.shape
    assert 0 <= pad_l <= W and 0 <= pad_r <= W, "circular pad needs pad <= W"
    assert 0 <= pad_t <= H and 0 <= pad_b <= H, "circular pad needs pad <= H"

    B = N * C
    H_out = H + pad_t + pad_b
    W_out = W + pad_l + pad_r
    xb = x.reshape(B, H, W)

    tb, vmem_limit = _plan_blocks(B, H, W, H_out, W_out, x.dtype.itemsize)
    kernel = functools.partial(_circular_pad_kernel, pad=pad)

    out = pl.pallas_call(
        kernel,
        out_shape=jax.ShapeDtypeStruct((B, H_out, W_out), x.dtype),
        grid=(pl.cdiv(B, tb),),
        in_specs=[pl.BlockSpec((tb, H, W), lambda i: (i, 0, 0))],
        out_specs=pl.BlockSpec((tb, H_out, W_out), lambda i: (i, 0, 0)),
        compiler_params=pltpu.CompilerParams(
            dimension_semantics=("parallel",),
            vmem_limit_bytes=vmem_limit),
    )(xb)
    return out.reshape(N, C, H_out, W_out)


# ----------------------------------------------------------------------------
# Self-check
# ----------------------------------------------------------------------------
if __name__ == "__main__":
    key = jax.random.PRNGKey(0)
    x = jax.random.normal(key, (2, 4, 16, 16), jnp.float32)   # NCHW

    # Full 4-sided circular pad (left, right, top, bottom) - F.pad order.
    pad = (1, 2, 3, 4)
    out = jax.block_until_ready(circular_pad2d(x, pad))
    ref = jnp.pad(x, ((0, 0), (0, 0), (pad[2], pad[3]), (pad[0], pad[1])),
                  mode="wrap")
    assert out.shape == (2, 4, 16 + pad[2] + pad[3], 16 + pad[0] + pad[1])
    assert out.dtype == x.dtype
    assert jnp.array_equal(out, ref), "mismatch vs reference (4-sided pad)"

    # Width-only pad (len-2 pad tuple), same PyTorch semantics.
    pad2 = (2, 3)
    out2 = jax.block_until_ready(circular_pad2d(x, pad2))
    ref2 = jnp.pad(x, ((0, 0), (0, 0), (0, 0), (pad2[0], pad2[1])),
                   mode="wrap")
    assert jnp.array_equal(out2, ref2), "mismatch vs reference (W-only pad)"

    print("KERNEL_OK")
</pallas_src>

<mosaic_0001>
module attributes {stable_mosaic.version = 11 : i64} {
  func.func @_circular_pad_kernel(%arg0: i32, %arg1: memref<4x16x16xf32, #tpu.memory_space<vmem>>, %arg2: memref<4x23x19xf32, #tpu.memory_space<vmem>>) attributes {dimension_semantics = [#tpu.dimension_semantics<parallel>], iteration_bounds = array<i64: 2>, scalar_prefetch = 0 : i64, scratch_operands = 0 : i64, tpu.core_type = #tpu.core_type<tc>, window_params = [{transform_indices = @transform_0, window_bounds = array<i64: 4, 16, 16>}, {transform_indices = @transform_1, window_bounds = array<i64: 4, 23, 19>}]} {
    %c0 = arith.constant 0 : index
    %c13 = arith.constant 13 : index
    %c15 = arith.constant 15 : index
    %0 = vector.load %arg1[%c0, %c13, %c15] : memref<4x16x16xf32, #tpu.memory_space<vmem>>, vector<4x3x1xf32>
    %c0_0 = arith.constant 0 : index
    %c0_1 = arith.constant 0 : index
    %c0_2 = arith.constant 0 : index
    %1 = vector.load %arg2[%c0_0, %c0_1, %c0_2] : memref<4x23x19xf32, #tpu.memory_space<vmem>>, vector<4x3x1xf32>
    tpu.vector_store %arg2[%c0_0, %c0_1, %c0_2], %0 {strides = array<i32>} : memref<4x23x19xf32, #tpu.memory_space<vmem>>, vector<4x3x1xf32>,
    %c0_3 = arith.constant 0 : index
    %c13_4 = arith.constant 13 : index
    %c0_5 = arith.constant 0 : index
    %2 = vector.load %arg1[%c0_3, %c13_4, %c0_5] : memref<4x16x16xf32, #tpu.memory_space<vmem>>, vector<4x3x16xf32>
    %c0_6 = arith.constant 0 : index
    %c0_7 = arith.constant 0 : index
    %c1 = arith.constant 1 : index
    %3 = vector.load %arg2[%c0_6, %c0_7, %c1] : memref<4x23x19xf32, #tpu.memory_space<vmem>>, vector<4x3x16xf32>
    tpu.vector_store %arg2[%c0_6, %c0_7, %c1], %2 {strides = array<i32>} : memref<4x23x19xf32, #tpu.memory_space<vmem>>, vector<4x3x16xf32>,
    %c0_8 = arith.constant 0 : index
    %c13_9 = arith.constant 13 : index
    %c0_10 = arith.constant 0 : index
    %4 = vector.load %arg1[%c0_8, %c13_9, %c0_10] : memref<4x16x16xf32, #tpu.memory_space<vmem>>, vector<4x3x2xf32>
    %c0_11 = arith.constant 0 : index
    %c0_12 = arith.constant 0 : index
    %c17 = arith.constant 17 : index
    %5 = vector.load %arg2[%c0_11, %c0_12, %c17] : memref<4x23x19xf32, #tpu.memory_space<vmem>>, vector<4x3x2xf32>
    tpu.vector_store %arg2[%c0_11, %c0_12, %c17], %4 {strides = array<i32>} : memref<4x23x19xf32, #tpu.memory_space<vmem>>, vector<4x3x2xf32>,
    %c0_13 = arith.constant 0 : index
    %c0_14 = arith.constant 0 : index
    %c15_15 = arith.constant 15 : index
    %6 = vector.load %arg1[%c0_13, %c0_14, %c15_15] : memref<4x16x16xf32, #tpu.memory_space<vmem>>, vector<4x16x1xf32>
    %c0_16 = arith.constant 0 : index
    %c3 = arith.constant 3 : index
    %c0_17 = arith.constant 0 : index
    %7 = vector.load %arg2[%c0_16, %c3, %c0_17] : memref<4x23x19xf32, #tpu.memory_space<vmem>>, vector<4x16x1xf32>
    tpu.vector_store %arg2[%c0_16, %c3, %c0_17], %6 {strides = array<i32>} : memref<4x23x19xf32, #tpu.memory_space<vmem>>, vector<4x16x1xf32>,
    %c0_18 = arith.constant 0 : index
    %c0_19 = arith.constant 0 : index
    %c0_20 = arith.constant 0 : index
    %8 = vector.load %arg1[%c0_18, %c0_19, %c0_20] : memref<4x16x16xf32, #tpu.memory_space<vmem>>, vector<4x16x16xf32>
    %c0_21 = arith.constant 0 : index
    %c3_22 = arith.constant 3 : index
    %c1_23 = arith.constant 1 : index
    %9 = vector.load %arg2[%c0_21, %c3_22, %c1_23] : memref<4x23x19xf32, #tpu.memory_space<vmem>>, vector<4x16x16xf32>
    tpu.vector_store %arg2[%c0_21, %c3_22, %c1_23], %8 {strides = array<i32>} : memref<4x23x19xf32, #tpu.memory_space<vmem>>, vector<4x16x16xf32>,
    %c0_24 = arith.constant 0 : index
    %c0_25 = arith.constant 0 : index
    %c0_26 = arith.constant 0 : index
    %10 = vector.load %arg1[%c0_24, %c0_25, %c0_26] : memref<4x16x16xf32, #tpu.memory_space<vmem>>, vector<4x16x2xf32>
    %c0_27 = arith.constant 0 : index
    %c3_28 = arith.constant 3 : index
    %c17_29 = arith.constant 17 : index
    %11 = vector.load %arg2[%c0_27, %c3_28, %c17_29] : memref<4x23x19xf32, #tpu.memory_space<vmem>>, vector<4x16x2xf32>
    tpu.vector_store %arg2[%c0_27, %c3_28, %c17_29], %10 {strides = array<i32>} : memref<4x23x19xf32, #tpu.memory_space<vmem>>, vector<4x16x2xf32>,
    %c0_30 = arith.constant 0 : index
    %c0_31 = arith.constant 0 : index
    %c15_32 = arith.constant 15 : index
    %12 = vector.load %arg1[%c0_30, %c0_31, %c15_32] : memref<4x16x16xf32, #tpu.memory_space<vmem>>, vector<4x4x1xf32>
    %c0_33 = arith.constant 0 : index
    %c19 = arith.constant 19 : index
    %c0_34 = arith.constant 0 : index
    %13 = vector.load %arg2[%c0_33, %c19, %c0_34] : memref<4x23x19xf32, #tpu.memory_space<vmem>>, vector<4x4x1xf32>
    tpu.vector_store %arg2[%c0_33, %c19, %c0_34], %12 {strides = array<i32>} : memref<4x23x19xf32, #tpu.memory_space<vmem>>, vector<4x4x1xf32>,
    %c0_35 = arith.constant 0 : index
    %c0_36 = arith.constant 0 : index
    %c0_37 = arith.constant 0 : index
    %14 = vector.load %arg1[%c0_35, %c0_36, %c0_37] : memref<4x16x16xf32, #tpu.memory_space<vmem>>, vector<4x4x16xf32>
    %c0_38 = arith.constant 0 : index
    %c19_39 = arith.constant 19 : index
    %c1_40 = arith.constant 1 : index
    %15 = vector.load %arg2[%c0_38, %c19_39, %c1_40] : memref<4x23x19xf32, #tpu.memory_space<vmem>>, vector<4x4x16xf32>
    tpu.vector_store %arg2[%c0_38, %c19_39, %c1_40], %14 {strides = array<i32>} : memref<4x23x19xf32, #tpu.memory_space<vmem>>, vector<4x4x16xf32>,
    %c0_41 = arith.constant 0 : index
    %c0_42 = arith.constant 0 : index
    %c0_43 = arith.constant 0 : index
    %16 = vector.load %arg1[%c0_41, %c0_42, %c0_43] : memref<4x16x16xf32, #tpu.memory_space<vmem>>, vector<4x4x2xf32>
    %c0_44 = arith.constant 0 : index
    %c19_45 = arith.constant 19 : index
    %c17_46 = arith.constant 17 : index
    %17 = vector.load %arg2[%c0_44, %c19_45, %c17_46] : memref<4x23x19xf32, #tpu.memory_space<vmem>>, vector<4x4x2xf32>
    tpu.vector_store %arg2[%c0_44, %c19_45, %c17_46], %16 {strides = array<i32>} : memref<4x23x19xf32, #tpu.memory_space<vmem>>, vector<4x4x2xf32>,
    return
  }
  func.func @transform_0(%arg0: i32) -> (i32, i32, i32) {
    %c0_i32 = arith.constant 0 : i32
    %c0_i32_0 = arith.constant 0 : i32
    %c0_i32_1 = arith.constant 0 : i32
    return %arg0, %c0_i32, %c0_i32_0 : i32, i32, i32
  }
  func.func @transform_1(%arg0: i32) -> (i32, i32, i32) {
    %c0_i32 = arith.constant 0 : i32
    %c0_i32_0 = arith.constant 0 : i32
    %c0_i32_1 = arith.constant 0 : i32
    return %arg0, %c0_i32, %c0_i32_0 : i32, i32, i32
  }
}

</mosaic_0001>

<llo_original>
// kernel: circular_pad2d.1
$region0: #{circular_pad2d.1}
  #allocation0 [shape = 'u32[]', space=smem, size = 0x4, offset = 0x4, fixed_abs, tag = 'smem constant byte address 0x4 - core index']
  #allocation1 [shape = 'u32[72,128]{1,0:T(1,128)}', space=vmem, size = 0x9000, scoped, tag = 'internal scratch']
  %s0 = inlined_call_operand.hbm [shape: f32[8,16,16], index: 0, kind: input, shape index: {}]
  %s1 = inlined_call_operand.vmem [shape: f32[8,23,19], index: 1, kind: output, shape index: {}]
  %s2 = sld [smem:[#allocation0]]
  $region41: #{circular_pad2d.1} parent=0
    _
  %s4 = ssub.s32 1, %s2
  %s5 = scalar_select 0, %s4, %s2
  $region1: #{circular_pad2d.1} parent=0
    #allocation2 [shape = 'u8[65536]{0}', space=vmem, size = 0x10000, scoped, tag = 'input window, operand 0']
    #allocation3 [shape = 's32[2]{0}', space=sflag, size = 0x8, scoped, tag = 'scoped memory for circular_pad2d.1']
    %6 = vsyncpa [#allocation3], 0
    %s7 = scalar_lea.sflag [#allocation3], 1
    %8 = vsyncpa %s7, 0
    loop: start=0, step=1, limit=4
    $region2: #{circular_pad2d.1} parent=1 // loop_pre_header
      _
    $region3: #{circular_pad2d.1} parent=1 // loop_header
      %s10 = sphi 0, %s14
      %p11 = scmp.ge.s32.totalorder %s10, 4
      %s20 = sphi 0, %s22
      %s23 = sphi 0, %s20
      %s24 = sphi 0, %s23
      %s40 = sphi 0, %s24
      %s46 = sphi 0, %s48
      %s49 = sphi 0, %s46
      %s50 = sphi 0, %s49
      %s66 = sphi 0, %s50
    $region4: #{circular_pad2d.1} parent=1 // loop_header_branch
      %13 = sbr.rel (%p11) target = $region8
    $region5: #{circular_pad2d.1} parent=1 // loop_body
      %s15 = ssub.s32 %s10, 1
      %s16 = ssub.s32 %s10, 2
      %s17 = sadd.s32 %s10, 1
      %s18 = ssub.s32 %s10, %s17
      %p19 = scmp.eq.s32.totalorder %s18, 0
      %s21 = sadd.s32 %s20, 1
      %s22 = scalar_select %p19, %s20, %s21
      %p25 = pneg %p19
      %p26 = scmp.eq.s32.totalorder %s10, 1
      %p27 = por %p25, %p26
      %p28 = scmp.ne.s32.totalorder %s20, %s23
      %p29 = scmp.eq.s32.totalorder %s10, 0
      %p30 = por %p28, %p29
      %p31 = scmp.ne.s32.totalorder %s20, %s23
      %p32 = scmp.eq.s32.totalorder %s15, 1
      %p33 = por %p31, %p32
      %p34 = scmp.ne.s32.totalorder %s23, %s24
      %p35 = scmp.eq.s32.totalorder %s15, 0
      %p36 = por %p34, %p35
      %p37 = scmp.ne.s32.totalorder %s23, %s24
      %p38 = scmp.eq.s32.totalorder %s16, 1
      %p39 = por %p37, %p38
      %p41 = scmp.ne.s32.totalorder %s24, %s40
      %p42 = scmp.eq.s32.totalorder %s16, 0
      %p43 = por %p41, %p42
      %s44 = ssub.s32 %s10, %s17
      %p45 = scmp.eq.s32.totalorder %s44, 0
      %s47 = sadd.s32 %s46, 1
      %s48 = scalar_select %p45, %s46, %s47
      %p51 = pneg %p45
      %p52 = scmp.eq.s32.totalorder %s10, 1
      %p53 = por %p51, %p52
      %p54 = scmp.ne.s32.totalorder %s46, %s49
      %p55 = scmp.eq.s32.totalorder %s10, 0
      %p56 = por %p54, %p55
      %p57 = scmp.ne.s32.totalorder %s46, %s49
      %p58 = scmp.eq.s32.totalorder %s15, 1
      %p59 = por %p57, %p58
      %p60 = scmp.ne.s32.totalorder %s49, %s50
      %p61 = scmp.eq.s32.totalorder %s15, 0
      %p62 = por %p60, %p61
      %p63 = scmp.ne.s32.totalorder %s49, %s50
      %p64 = scmp.eq.s32.totalorder %s16, 1
      %p65 = por %p63, %p64
      %p67 = scmp.ne.s32.totalorder %s50, %s66
      %p68 = scmp.eq.s32.totalorder %s16, 0
      %p69 = por %p67, %p68
      %p70 = scmp.le.s32.totalorder 1, %s10
      %p71 = scmp.lt.s32.totalorder %s10, 3
      %p72 = pnand %p70, %p71
      %p73 = pneg %p72
      // Predicated region
      $region9: #{circular_pad2d.1} parent=5 // pred_check
        _
      $region10: #{circular_pad2d.1} parent=5 // pred_check_branch
        %75 = sbr.rel (%p72) target = $region12
      $region11: #{circular_pad2d.1} parent=5 // pred_region
        %s76 = ssub.s32 %s10, 1
      $region12: #{circular_pad2d.1} parent=5 // pred_fallthru
        _
      %p77 = scmp.lt.s32.totalorder %s10, 2
      // Predicated region
      $region13: #{circular_pad2d.1} parent=5 // pred_check
        %p78 = pneg %p77
      $region14: #{circular_pad2d.1} parent=5 // pred_check_branch
        %80 = sbr.rel (%p78) target = $region16
      $region15: #{circular_pad2d.1} parent=5 // pred_region
        // Predicated region
        $region17: #{circular_pad2d.1} parent=15 // pred_check
          %p81 = pneg %p30
        $region18: #{circular_pad2d.1} parent=15 // pred_check_branch
          %83 = sbr.rel (%p81) target = $region20
        $region19: #{circular_pad2d.1} parent=15 // pred_region
          %s84 = sand.u32 %s20, 1
          %s85 = scalar_lea.sflag [#allocation3], %s84
          %s86 = sand.u32 %s20, 1
          %s87 = smul.addr %s86, 64
          %s88 = scalar_lea.vmem [#allocation2], %s87
          %s89 = smul.u32 4, %s10
          %91 = vsyncadd %s85, 0
          %s92 = smul.addr %s89, 2
          %s93 = smul.addr %s92, 8
          %s94 = scalar_lea.hbm %s0, %s93
          %s95 = sshll.u32 %s94, 4
          %s96 = int_to_ptr.hbm [resolvable:$true] %s95
          %s97 = sshll.u32 %s88, 4
          %s98 = int_to_ptr.vmem [resolvable:$true] %s97
          %103 = dma.hbm_to_vmem [thread:$0]  %s96, 1024, %s98, %s85, 128, 128, 8
        $region20: #{circular_pad2d.1} parent=15 // pred_fallthru
          _
      $region16: #{circular_pad2d.1} parent=5 // pred_fallthru
        _
      %p104 = scmp.le.s32.totalorder 1, %s10
      %p105 = scmp.lt.s32.totalorder %s10, 3
      %p106 = pnand %p104, %p105
      %p107 = pneg %p106
      // Predicated region
      $region21: #{circular_pad2d.1} parent=5 // pred_check
        _
      $region22: #{circular_pad2d.1} parent=5 // pred_check_branch
        %109 = sbr.rel (%p106) target = $region24
      $region23: #{circular_pad2d.1} parent=5 // pred_region
        %s110 = ssub.s32 %s10, 1
        %s111 = sand.u32 %s23, 1
        %s112 = scalar_lea.sflag [#allocation3], %s111
        %s113 = sand.u32 %s23, 1
        %s114 = smul.addr %s113, 64
        %s115 = scalar_lea.vmem [#allocation2], %s114
        // Predicated region
        $region25: #{circular_pad2d.1} parent=23 // pred_check
          %p116 = pneg %p36
        $region26: #{circular_pad2d.1} parent=23 // pred_check_branch
          %118 = sbr.rel (%p116) target = $region28
        $region27: #{circular_pad2d.1} parent=23 // pred_region
          %120 = dma.done %s112, 1024
        $region28: #{circular_pad2d.1} parent=23 // pred_fallthru
          _
        %s121 = sand.u32 %s23, 1
        %s122 = scalar_lea.sflag [#allocation3], %s121
        %s123 = sand.u32 %s23, 1
        %s124 = smul.addr %s123, 64
        %s125 = scalar_lea.vmem [#allocation2], %s124
        %p126 = pneg %p36
        %p127 = pneg %p33
        %p128 = pneg %p62
        %p129 = pneg %p59
        %s130 = smul.u32 4, %s15
        %p131 = scmp.lt.s32.totalorder %s130, 7
        %s132 = scalar_select %p131, %s130, 7
        %s133 = smul.addr %s132, 3
        %s134 = smul.addr %s133, 8
        %s135 = scalar_lea.vmem %s1, %s134
        %s136 = smul.u32 4, %s15
        %s137 = smul.u32 4, %s15
        %p138 = scmp.lt.s32.totalorder %s137, 7
        %s139 = scalar_select %p138, %s137, 7
        %s140 = smul.addr %s139, 3
        %s141 = smul.addr %s140, 8
        %s142 = scalar_lea.vmem %s1, %s141
        %s143 = smul.u32 4, %s15
        %v144 = vld [vmem:[%s115 + $0xd] sm:$0x7]
        %v145 = vld [vmem:[%s115 + $0x1d] sm:$0x7]
        %v146 = vld [vmem:[%s115 + $0x2d] sm:$0x7]
        %v147 = vld [vmem:[%s115 + $0x3d] sm:$0x7]
        %152 = vrot.lane.b32.xlu0 %v144, 113
        %v153 = vpop.permute.xlu0 %152
        %154 = vrot.lane.b32.xlu0 %v145, 113
        %v155 = vpop.permute.xlu0 %154
        %156 = vrot.lane.b32.xlu0 %v146, 113
        %v157 = vpop.permute.xlu0 %156
        %158 = vrot.lane.b32.xlu0 %v147, 113
        %v159 = vpop.permute.xlu0 %158
        %vm164 = vcmask 2048
        %165 = vst.msk [vmem:[%s142] sm:$0x7] %vm164, %v153
        %166 = vst.msk [vmem:[%s142 + $0x18] sm:$0x7] %vm164, %v155
        %167 = vst.msk [vmem:[%s142 + $0x30] sm:$0x7] %vm164, %v157
        %168 = vst.msk [vmem:[%s142 + $0x48] sm:$0x7] %vm164, %v159
        %v169 = vld [vmem:[%s115 + $0xd] sm:$0x7]
        %v170 = vld [vmem:[%s115 + $0x1d] sm:$0x7]
        %v171 = vld [vmem:[%s115 + $0x2d] sm:$0x7]
        %v172 = vld [vmem:[%s115 + $0x3d] sm:$0x7]
        %177 = vrot.lane.b32.xlu0 %v169, 1
        %v178 = vpop.permute.xlu0 %177
        %179 = vrot.lane.b32.xlu0 %v170, 1
        %v180 = vpop.permute.xlu0 %179
        %181 = vrot.lane.b32.xlu0 %v171, 1
        %v182 = vpop.permute.xlu0 %181
        %183 = vrot.lane.b32.xlu0 %v172, 1
        %v184 = vpop.permute.xlu0 %183
        %vm189 = vcmask 133128
        %190 = vst.msk [vmem:[%s142] sm:$0x7] %vm189, %v178
        %191 = vst.msk [vmem:[%s142 + $0x18] sm:$0x7] %vm189, %v180
        %192 = vst.msk [vmem:[%s142 + $0x30] sm:$0x7] %vm189, %v182
        %193 = vst.msk [vmem:[%s142 + $0x48] sm:$0x7] %vm189, %v184
        %v194 = vld [vmem:[%s115 + $0xd] sm:$0x7]
        %v195 = vld [vmem:[%s115 + $0x1d] sm:$0x7]
        %v196 = vld [vmem:[%s115 + $0x2d] sm:$0x7]
        %v197 = vld [vmem:[%s115 + $0x3d] sm:$0x7]
        %202 = vrot.lane.b32.xlu0 %v194, 17
        %v203 = vpop.permute.xlu0 %202
        %204 = vrot.lane.b32.xlu0 %v195, 17
        %v205 = vpop.permute.xlu0 %204
        %206 = vrot.lane.b32.xlu0 %v196, 17
        %v207 = vpop.permute.xlu0 %206
        %208 = vrot.lane.b32.xlu0 %v197, 17
        %v209 = vpop.permute.xlu0 %208
        %vm214 = vcmask 149640
        %215 = vst.msk [vmem:[%s142] sm:$0x7] %vm214, %v203
        %216 = vst.msk [vmem:[%s142 + $0x18] sm:$0x7] %vm214, %v205
        %217 = vst.msk [vmem:[%s142 + $0x30] sm:$0x7] %vm214, %v207
        %218 = vst.msk [vmem:[%s142 + $0x48] sm:$0x7] %vm214, %v209
        %v219 = vld [vmem:[%s115] sm:$0xff]
        %v220 = vld [vmem:[%s115 + $0x8] sm:$0xff]
        %v221 = vld [vmem:[%s115 + $0x10] sm:$0xff]
        %v222 = vld [vmem:[%s115 + $0x18] sm:$0xff]
        %v223 = vld [vmem:[%s115 + $0x20] sm:$0xff]
        %v224 = vld [vmem:[%s115 + $0x28] sm:$0xff]
        %v225 = vld [vmem:[%s115 + $0x30] sm:$0xff]
        %v226 = vld [vmem:[%s115 + $0x38] sm:$0xff]
        %235 = vrot.lane.b32.xlu0 %v219, 113
        %v236 = vpop.permute.xlu0 %235
        %237 = vrot.lane.b32.xlu0 %v220, 113
        %v238 = vpop.permute.xlu0 %237
        %239 = vrot.lane.b32.xlu0 %v221, 113
        %v240 = vpop.permute.xlu0 %239
        %241 = vrot.lane.b32.xlu0 %v222, 113
        %v242 = vpop.permute.xlu0 %241
        %243 = vrot.lane.b32.xlu0 %v223, 113
        %v244 = vpop.permute.xlu0 %243
        %245 = vrot.lane.b32.xlu0 %v224, 113
        %v246 = vpop.permute.xlu0 %245
        %247 = vrot.lane.b32.xlu0 %v225, 113
        %v248 = vpop.permute.xlu0 %247
        %249 = vrot.lane.b32.xlu0 %v226, 113
        %v250 = vpop.permute.xlu0 %249
        %vm259 = vcmask 7168
        %260 = vst.msk [vmem:[%s142 + $0x3] sm:$0xff] %vm259, %v236
        %261 = vst.msk [vmem:[%s142 + $0xb] sm:$0xff] %vm259, %v238
        %262 = vst.msk [vmem:[%s142 + $0x1b] sm:$0xff] %vm259, %v240
        %263 = vst.msk [vmem:[%s142 + $0x23] sm:$0xff] %vm259, %v242
        %264 = vst.msk [vmem:[%s142 + $0x33] sm:$0xff] %vm259, %v244
        %265 = vst.msk [vmem:[%s142 + $0x3b] sm:$0xff] %vm259, %v246
        %266 = vst.msk [vmem:[%s142 + $0x4b] sm:$0xff] %vm259, %v248
        %267 = vst.msk [vmem:[%s142 + $0x53] sm:$0xff] %vm259, %v250
        %v268 = vld [vmem:[%s115] sm:$0xff]
        %v269 = vld [vmem:[%s115 + $0x8] sm:$0xff]
        %v270 = vld [vmem:[%s115 + $0x10] sm:$0xff]
        %v271 = vld [vmem:[%s115 + $0x18] sm:$0xff]
        %v272 = vld [vmem:[%s115 + $0x20] sm:$0xff]
        %v273 = vld [vmem:[%s115 + $0x28] sm:$0xff]
        %v274 = vld [vmem:[%s115 + $0x30] sm:$0xff]
        %v275 = vld [vmem:[%s115 + $0x38] sm:$0xff]
        %284 = vrot.lane.b32.xlu0 %v268, 1
        %v285 = vpop.permute.xlu0 %284
        %286 = vrot.lane.b32.xlu0 %v269, 1
        %v287 = vpop.permute.xlu0 %286
        %288 = vrot.lane.b32.xlu0 %v270, 1
        %v289 = vpop.permute.xlu0 %288
        %290 = vrot.lane.b32.xlu0 %v271, 1
        %v291 = vpop.permute.xlu0 %290
        %292 = vrot.lane.b32.xlu0 %v272, 1
        %v293 = vpop.permute.xlu0 %292
        %294 = vrot.lane.b32.xlu0 %v273, 1
        %v295 = vpop.permute.xlu0 %294
        %296 = vrot.lane.b32.xlu0 %v274, 1
        %v297 = vpop.permute.xlu0 %296
        %298 = vrot.lane.b32.xlu0 %v275, 1
        %v299 = vpop.permute.xlu0 %298
        %vm308 = vcmask 138248
        %309 = vst.msk [vmem:[%s142 + $0x3] sm:$0xff] %vm308, %v285
        %310 = vst.msk [vmem:[%s142 + $0xb] sm:$0xff] %vm308, %v287
        %311 = vst.msk [vmem:[%s142 + $0x1b] sm:$0xff] %vm308, %v289
        %312 = vst.msk [vmem:[%s142 + $0x23] sm:$0xff] %vm308, %v291
        %313 = vst.msk [vmem:[%s142 + $0x33] sm:$0xff] %vm308, %v293
        %314 = vst.msk [vmem:[%s142 + $0x3b] sm:$0xff] %vm308, %v295
        %315 = vst.msk [vmem:[%s142 + $0x4b] sm:$0xff] %vm308, %v297
        %316 = vst.msk [vmem:[%s142 + $0x53] sm:$0xff] %vm308, %v299
        %v317 = vld [vmem:[%s115] sm:$0xff]
        %v318 = vld [vmem:[%s115 + $0x8] sm:$0xff]
        %v319 = vld [vmem:[%s115 + $0x10] sm:$0xff]
        %v320 = vld [vmem:[%s115 + $0x18] sm:$0xff]
        %v321 = vld [vmem:[%s115 + $0x20] sm:$0xff]
        %v322 = vld [vmem:[%s115 + $0x28] sm:$0xff]
        %v323 = vld [vmem:[%s115 + $0x30] sm:$0xff]
        %v324 = vld [vmem:[%s115 + $0x38] sm:$0xff]
        %333 = vrot.lane.b32.xlu0 %v317, 17
        %v334 = vpop.permute.xlu0 %333
        %335 = vrot.lane.b32.xlu0 %v318, 17
        %v336 = vpop.permute.xlu0 %335
        %337 = vrot.lane.b32.xlu0 %v319, 17
        %v338 = vpop.permute.xlu0 %337
        %339 = vrot.lane.b32.xlu0 %v320, 17
        %v340 = vpop.permute.xlu0 %339
        %341 = vrot.lane.b32.xlu0 %v321, 17
        %v342 = vpop.permute.xlu0 %341
        %343 = vrot.lane.b32.xlu0 %v322, 17
        %v344 = vpop.permute.xlu0 %343
        %345 = vrot.lane.b32.xlu0 %v323, 17
        %v346 = vpop.permute.xlu0 %345
        %347 = vrot.lane.b32.xlu0 %v324, 17
        %v348 = vpop.permute.xlu0 %347
        %vm357 = vcmask 154760
        %358 = vst.msk [vmem:[%s142 + $0x3] sm:$0xff] %vm357, %v334
        %359 = vst.msk [vmem:[%s142 + $0xb] sm:$0xff] %vm357, %v336
        %360 = vst.msk [vmem:[%s142 + $0x1b] sm:$0xff] %vm357, %v338
        %361 = vst.msk [vmem:[%s142 + $0x23] sm:$0xff] %vm357, %v340
        %362 = vst.msk [vmem:[%s142 + $0x33] sm:$0xff] %vm357, %v342
        %363 = vst.msk [vmem:[%s142 + $0x3b] sm:$0xff] %vm357, %v344
        %364 = vst.msk [vmem:[%s142 + $0x4b] sm:$0xff] %vm357, %v346
        %365 = vst.msk [vmem:[%s142 + $0x53] sm:$0xff] %vm357, %v348
        %v366 = vld [vmem:[%s115] sm:$0xf]
        %v367 = vld [vmem:[%s115 + $0x10] sm:$0xf]
        %v368 = vld [vmem:[%s115 + $0x20] sm:$0xf]
        %v369 = vld [vmem:[%s115 + $0x30] sm:$0xf]
        %374 = vrot.lane.b32.xlu0 %v366, 113
        %v375 = vpop.permute.xlu0 %374
        %376 = vrot.lane.b32.xlu0 %v367, 113
        %v377 = vpop.permute.xlu0 %376
        %378 = vrot.lane.b32.xlu0 %v368, 113
        %v379 = vpop.permute.xlu0 %378
        %380 = vrot.lane.b32.xlu0 %v369, 113
        %v381 = vpop.permute.xlu0 %380
        %vm386 = vcmask 3072
        %387 = vst.msk [vmem:[%s142 + $0x13] sm:$0xf] %vm386, %v375
        %388 = vst.msk [vmem:[%s142 + $0x2b] sm:$0xf] %vm386, %v377
        %389 = vst.msk [vmem:[%s142 + $0x43] sm:$0xf] %vm386, %v379
        %390 = vst.msk [vmem:[%s142 + $0x5b] sm:$0xf] %vm386, %v381
        %v391 = vld [vmem:[%s115] sm:$0xf]
        %v392 = vld [vmem:[%s115 + $0x10] sm:$0xf]
        %v393 = vld [vmem:[%s115 + $0x20] sm:$0xf]
        %v394 = vld [vmem:[%s115 + $0x30] sm:$0xf]
        %399 = vrot.lane.b32.xlu0 %v391, 1
        %v400 = vpop.permute.xlu0 %399
        %401 = vrot.lane.b32.xlu0 %v392, 1
        %v402 = vpop.permute.xlu0 %401
        %403 = vrot.lane.b32.xlu0 %v393, 1
        %v404 = vpop.permute.xlu0 %403
        %405 = vrot.lane.b32.xlu0 %v394, 1
        %v406 = vpop.permute.xlu0 %405
        %vm411 = vcmask 134152
        %412 = vst.msk [vmem:[%s142 + $0x13] sm:$0xf] %vm411, %v400
        %413 = vst.msk [vmem:[%s142 + $0x2b] sm:$0xf] %vm411, %v402
        %414 = vst.msk [vmem:[%s142 + $0x43] sm:$0xf] %vm411, %v404
        %415 = vst.msk [vmem:[%s142 + $0x5b] sm:$0xf] %vm411, %v406
        %v416 = vld [vmem:[%s115] sm:$0xf]
        %v417 = vld [vmem:[%s115 + $0x10] sm:$0xf]
        %v418 = vld [vmem:[%s115 + $0x20] sm:$0xf]
        %v419 = vld [vmem:[%s115 + $0x30] sm:$0xf]
        %424 = vrot.lane.b32.xlu0 %v416, 17
        %v425 = vpop.permute.xlu0 %424
        %426 = vrot.lane.b32.xlu0 %v417, 17
        %v427 = vpop.permute.xlu0 %426
        %428 = vrot.lane.b32.xlu0 %v418, 17
        %v429 = vpop.permute.xlu0 %428
        %430 = vrot.lane.b32.xlu0 %v419, 17
        %v431 = vpop.permute.xlu0 %430
        %vm436 = vcmask 150664
        %437 = vst.msk [vmem:[%s142 + $0x13] sm:$0xf] %vm436, %v425
        %438 = vst.msk [vmem:[%s142 + $0x2b] sm:$0xf] %vm436, %v427
        %439 = vst.msk [vmem:[%s142 + $0x43] sm:$0xf] %vm436, %v429
        %440 = vst.msk [vmem:[%s142 + $0x5b] sm:$0xf] %vm436, %v431
        %s441 = smul.u32 4, %s15
        %p442 = scmp.lt.s32.totalorder %s441, 7
        %s443 = scalar_select %p442, %s441, 7
        %s444 = smul.addr %s443, 3
        %s445 = smul.addr %s444, 8
        %s446 = scalar_lea.vmem %s1, %s445
        // Predicated region
        $region29: #{circular_pad2d.1} parent=23 // pred_check
          %p447 = pneg %p59
        $region30: #{circular_pad2d.1} parent=23 // pred_check_branch
          %449 = sbr.rel (%p447) target = $region32
        $region31: #{circular_pad2d.1} parent=23 // pred_region
          %s450 = smul.u32 4, %s15
        $region32: #{circular_pad2d.1} parent=23 // pred_fallthru
          _
      $region24: #{circular_pad2d.1} parent=5 // pred_fallthru
        _
      %p451 = scmp.le.s32.totalorder 2, %s10
      // Predicated region
      $region33: #{circular_pad2d.1} parent=5 // pred_check
        %p452 = pneg %p451
      $region34: #{circular_pad2d.1} parent=5 // pred_check_branch
        %454 = sbr.rel (%p452) target = $region36
      $region35: #{circular_pad2d.1} parent=5 // pred_region
        %s455 = ssub.s32 %s10, 2
        // Predicated region
        $region37: #{circular_pad2d.1} parent=35 // pred_check
          %p456 = pneg %p65
        $region38: #{circular_pad2d.1} parent=35 // pred_check_branch
          %458 = sbr.rel (%p456) target = $region40
        $region39: #{circular_pad2d.1} parent=35 // pred_region
          %s459 = smul.u32 4, %s16
          %p460 = scmp.lt.s32.totalorder %s459, 7
          %s461 = scalar_select %p460, %s459, 7
          %s462 = smul.addr %s461, 3
          %s463 = smul.addr %s462, 8
          %s464 = scalar_lea.vmem %s1, %s463
        $region40: #{circular_pad2d.1} parent=35 // pred_fallthru
          _
      $region36: #{circular_pad2d.1} parent=5 // pred_fallthru
        _
    $region6: #{circular_pad2d.1} parent=1 // loop_footer
      %s14 = sadd.s32 1, %s10
    $region7: #{circular_pad2d.1} parent=1 // loop_footer_branch
      %9 = sbr.rel target = $region3
    $region8: #{circular_pad2d.1} parent=1 // loop_exit
      _
    %465 = vsyncpa [#allocation3], 1
    %s466 = scalar_lea.sflag [#allocation3], 1
    %467 = vsyncpa %s466, 1

</llo_original>
